<compile_context>
chip_gen: v5e
topology: v5e:2x2
jax: 0.10.0
libtpu: 0.0.40
codegen_flags: <defaults>
</compile_context>

<pallas_src>
import jax
import jax.numpy as jnp
from jax.experimental import pallas as pl
from jax.experimental.pallas import tpu as pltpu


def _segment_embedding_kernel(ids_ref, table_ref, out_ref):
    # ids_ref:   [TILE_N, 1] int32  (VMEM)
    # table_ref: [V, H]             (VMEM, resident across all grid steps)
    # out_ref:   [TILE_N, H]        (table dtype)
    ids = ids_ref[...]                                   # [tn, 1]
    tile_n = ids.shape[0]
    v_count, hidden = table_ref.shape

    # Hoist the lane broadcast of the ids once (XLU), compare per-row after.
    ids_b = jnp.broadcast_to(ids, (tile_n, hidden))      # [tn, H] int32

    if v_count == 2:
        # Single VPU select in the table's native dtype (bf16-native on v6e/v7x).
        out_ref[...] = jnp.where(ids_b == 0,
                                 table_ref[0:1, :],      # [1, H], broadcast in where
                                 table_ref[1:2, :])
    else:
        # General (still tiny) V: static select chain, init with row 0 so any
        # out-of-range / padded id maps to a valid row (never indexes by id).
        acc = jnp.broadcast_to(table_ref[0:1, :], (tile_n, hidden))
        for v in range(1, v_count):
            acc = jnp.where(ids_b == v, table_ref[v:v + 1, :], acc)
        out_ref[...] = acc


def _round_up(x, m):
    return ((x + m - 1) // m) * m


def segment_embedding(token_type_ids, table, *, tile_n=1024,
                      vmem_budget_bytes=12 * 1024 * 1024):
    """token_type_ids: [seq_len, batch] int. table: [type_vocab_size, hidden].

    Returns [seq_len, batch, hidden] in table.dtype (matches nn.Embedding forward).
    Note: out-of-range ids silently map to row (V-1) / a valid row instead of
    raising like PyTorch — acceptable for padded rows.
    """
    S, B = token_type_ids.shape
    V, H = table.shape
    N = S * B
    itemsize = jnp.dtype(table.dtype).itemsize

    ids_flat = token_type_ids.reshape(N, 1).astype(jnp.int32)

    # Row tile: multiple of 8 sublanes, capped by (a) requested tile_n,
    # (b) the double-buffered output VMEM budget, (c) the (rounded) row count.
    max_tn_vmem = max(8, ((vmem_budget_bytes // (2 * H * itemsize)) // 8) * 8)
    tn = min(_round_up(tile_n, 8), max_tn_vmem, _round_up(N, 8))

    grid = (pl.cdiv(N, tn),)   # ragged last block handled by Pallas (no pad/slice)

    cost = pl.CostEstimate(
        flops=int(N * H * max(V - 1, 1)),        # the select chain
        transcendentals=0,
        bytes_accessed=int(N * 4 + V * H * itemsize + N * H * itemsize),
    )

    out = pl.pallas_call(
        _segment_embedding_kernel,
        out_shape=jax.ShapeDtypeStruct((N, H), table.dtype),
        grid=grid,
        in_specs=[
            pl.BlockSpec((tn, 1), lambda i: (i, 0)),     # lane-thin id tile
            pl.BlockSpec((V, H), lambda i: (0, 0)),      # whole tiny table, resident
        ],
        out_specs=pl.BlockSpec((tn, H), lambda i: (i, 0)),
        compiler_params=pltpu.CompilerParams(
            dimension_semantics=("parallel",)),
        cost_estimate=cost,
    )(ids_flat, table)

    return out.reshape(S, B, H)


if __name__ == "__main__":
    # Small shapes consistent with the module's forward.
    type_vocab_size = 2
    hidden_size = 32
    seq_len, batch = 8, 2

    key = jax.random.PRNGKey(0)
    k_w, k_ids = jax.random.split(key)

    # nn.Embedding weight ~ N(0, 1)
    table = jax.random.normal(k_w, (type_vocab_size, hidden_size), jnp.float32)
    token_type_ids = jax.random.randint(
        k_ids, (seq_len, batch), 0, type_vocab_size, jnp.int32)

    out = segment_embedding(token_type_ids, table)
    out = jax.block_until_ready(out)
    assert out.shape == (seq_len, batch, hidden_size)

    # Reference: plain gather (what nn.Embedding's forward computes).
    ref = jnp.take(table, token_type_ids, axis=0)
    assert jnp.allclose(out, ref), "Pallas segment embedding mismatch vs reference"

    print("KERNEL_OK")
</pallas_src>

<mosaic_0001>
module attributes {stable_mosaic.version = 11 : i64} {
  func.func @_segment_embedding_kernel(%arg0: i32, %arg1: memref<16x1xi32, #tpu.memory_space<vmem>>, %arg2: memref<2x32xf32, #tpu.memory_space<vmem>>, %arg3: memref<16x32xf32, #tpu.memory_space<vmem>>) attributes {dimension_semantics = [#tpu.dimension_semantics<parallel>], iteration_bounds = array<i64: 1>, scalar_prefetch = 0 : i64, scratch_operands = 0 : i64, tpu.core_type = #tpu.core_type<tc>, window_params = [{transform_indices = @transform_0, window_bounds = array<i64: 16, 1>}, {pipeline_mode = #tpu.pipeline_mode<synchronous>, transform_indices = @transform_1, window_bounds = array<i64: 2, 32>}, {transform_indices = @transform_2, window_bounds = array<i64: 16, 32>}]} {
    %c0 = arith.constant 0 : index
    %c0_0 = arith.constant 0 : index
    %0 = vector.load %arg1[%c0, %c0_0] : memref<16x1xi32, #tpu.memory_space<vmem>>, vector<16x1xi32>
    %1 = vector.shape_cast %0 : vector<16x1xi32> to vector<16x1xi32>
    %2 = vector.broadcast %1 : vector<16x1xi32> to vector<16x32xi32>
    %c0_i32 = arith.constant 0 : i32
    %3 = vector.broadcast %c0_i32 : i32 to vector<16x32xi32>
    %4 = arith.cmpi eq, %2, %3 : vector<16x32xi32>
    %c0_1 = arith.constant 0 : index
    %c0_2 = arith.constant 0 : index
    %5 = vector.load %arg2[%c0_1, %c0_2] : memref<2x32xf32, #tpu.memory_space<vmem>>, vector<1x32xf32>
    %c1 = arith.constant 1 : index
    %c0_3 = arith.constant 0 : index
    %6 = vector.load %arg2[%c1, %c0_3] : memref<2x32xf32, #tpu.memory_space<vmem>>, vector<1x32xf32>
    %7 = vector.shape_cast %5 : vector<1x32xf32> to vector<1x32xf32>
    %8 = vector.broadcast %7 : vector<1x32xf32> to vector<16x32xf32>
    %9 = vector.shape_cast %6 : vector<1x32xf32> to vector<1x32xf32>
    %10 = vector.broadcast %9 : vector<1x32xf32> to vector<16x32xf32>
    %11 = arith.select %4, %8, %10 : vector<16x32xi1>, vector<16x32xf32>
    %c0_4 = arith.constant 0 : index
    %c0_5 = arith.constant 0 : index
    %12 = vector.load %arg3[%c0_4, %c0_5] : memref<16x32xf32, #tpu.memory_space<vmem>>, vector<16x32xf32>
    tpu.vector_store %arg3[%c0_4, %c0_5], %11 {strides = array<i32>} : memref<16x32xf32, #tpu.memory_space<vmem>>, vector<16x32xf32>,
    return
  }
  func.func @transform_0(%arg0: i32) -> (i32, i32) {
    %c0_i32 = arith.constant 0 : i32
    %c0_i32_0 = arith.constant 0 : i32
    return %arg0, %c0_i32 : i32, i32
  }
  func.func @transform_1(%arg0: i32) -> (i32, i32) {
    %c0_i32 = arith.constant 0 : i32
    %c0_i32_0 = arith.constant 0 : i32
    %c0_i32_1 = arith.constant 0 : i32
    return %c0_i32, %c0_i32_0 : i32, i32
  }
  func.func @transform_2(%arg0: i32) -> (i32, i32) {
    %c0_i32 = arith.constant 0 : i32
    %c0_i32_0 = arith.constant 0 : i32
    return %arg0, %c0_i32 : i32, i32
  }
}

</mosaic_0001>

<llo_original>
// kernel: tpu_custom_call.1
$region0: #{tpu_custom_call.1}
  #allocation0 [shape = 'u32[]', space=smem, size = 0x4, offset = 0x4, fixed_abs, tag = 'smem constant byte address 0x4 - core index']
  #allocation1 [shape = 'u32[72,128]{1,0:T(1,128)}', space=vmem, size = 0x9000, scoped, tag = 'internal scratch']
  %s0 = inlined_call_operand.vmem [shape: s32[16,1], index: 0, kind: input, shape index: {}]
  %s1 = inlined_call_operand.vmem [shape: f32[2,32], index: 1, kind: input, shape index: {}]
  %s2 = inlined_call_operand.hbm [shape: f32[16,32], index: 2, kind: output, shape index: {}]
  %s3 = sld [smem:[#allocation0]]
  $region18: #{tpu_custom_call.1} parent=0
    _
  %s5 = ssub.s32 1, %s3
  %s6 = scalar_select 0, %s5, %s3
  $region1: #{tpu_custom_call.1} parent=0
    #allocation2 [shape = 'u8[8192]{0}', space=vmem, size = 0x2000, scoped, tag = 'output window, operand 0, single buffered']
    #allocation3 [shape = 's32[1]{0}', space=sflag, size = 0x4, scoped, tag = 'scoped memory for tpu_custom_call.1']
    %7 = vsyncpa [#allocation3], 0
    // Predicated region
    $region2: #{tpu_custom_call.1} parent=1 // pred_check
      _
    $region3: #{tpu_custom_call.1} parent=1 // pred_check_branch
      %9 = sbr.rel (0) target = $region5
    $region4: #{tpu_custom_call.1} parent=1 // pred_region
      _
    $region5: #{tpu_custom_call.1} parent=1 // pred_fallthru
      _
    // Predicated region
    $region6: #{tpu_custom_call.1} parent=1 // pred_check
      _
    $region7: #{tpu_custom_call.1} parent=1 // pred_check_branch
      %11 = sbr.rel (0) target = $region9
    $region8: #{tpu_custom_call.1} parent=1 // pred_region
      _
    $region9: #{tpu_custom_call.1} parent=1 // pred_fallthru
      _
    %v12 = vld [vmem:[%s0] sm:$0xff]
    %v13 = vld [vmem:[%s0 + $0x8] sm:$0xff]
    %14 = vset.pattern.permute.xlu0 0
    %15 = vperm.xlu0 %14, %v12
    %v16 = vpop.permute.xlu0 %15
    %17 = vset.pattern.permute.xlu0 0
    %18 = vperm.xlu0 %17, %v13
    %v19 = vpop.permute.xlu0 %18
    %vm20 = vcmp.eq.s32.totalorder %v16, 0
    %vm21 = vcmp.eq.s32.totalorder %v19, 0
    %v22 = vld [vmem:[%s1] sm:$0x1]
    %v23 = vld [vmem:[%s1 + $0x1] sm:$0x1]
    %v24 = vperm.slane %v22, 0
    %v25 = vperm.slane %v23, 0
    %v26 = vsel %vm20, %v24, %v25
    %v27 = vsel %vm21, %v24, %v25
    %vm28 = vcmask 261120
    %29 = vst.msk [vmem:[#allocation2] sm:$0xff] %vm28, %v26
    %30 = vst.msk [vmem:[#allocation2 + $0x8] sm:$0xff] %vm28, %v27
    // Predicated region
    $region10: #{tpu_custom_call.1} parent=1 // pred_check
      _
    $region11: #{tpu_custom_call.1} parent=1 // pred_check_branch
      %32 = sbr.rel (0) target = $region13
    $region12: #{tpu_custom_call.1} parent=1 // pred_region
      %34 = vsyncadd [#allocation3], 0
      %s35 = sshll.u32 [#allocation2], 4
      %s36 = int_to_ptr.vmem [resolvable:$true] %s35
      %s37 = sshll.u32 %s2, 4
      %s38 = int_to_ptr.hbm [resolvable:$true] %s37
      %43 = dma.vmem_to_hbm [thread:$0]  %s36, 256, %s38, [#allocation3], 128, 128, 8
    $region13: #{tpu_custom_call.1} parent=1 // pred_fallthru
      _
    // Predicated region
    $region14: #{tpu_custom_call.1} parent=1 // pred_check
      _
    $region15: #{tpu_custom_call.1} parent=1 // pred_check_branch
      %45 = sbr.rel (0) target = $region17
    $region16: #{tpu_custom_call.1} parent=1 // pred_region
      %47 = dma.done [#allocation3], 256
    $region17: #{tpu_custom_call.1} parent=1 // pred_fallthru
      _
    %48 = vsyncpa [#allocation3], 1

</llo_original>
